<compile_context>
chip_gen: v6e
topology: v6e:2x2x1
jax: 0.10.0
libtpu: 0.0.40
codegen_flags: <defaults>
</compile_context>

<pallas_src>
import math

import jax
import jax.numpy as jnp
from jax.experimental import pallas as pl
from jax.experimental.pallas import tpu as pltpu


# --------------------------------------------------------------------------
# Parameter init (matches PyTorch: xavier_uniform_ weights, default bias init)
# Weights are kept in PyTorch (out_features, in_features) layout since the
# kernel computes in the transposed (features-major) orientation.
# --------------------------------------------------------------------------
def _xavier_uniform(key, fan_in, fan_out, shape):
    limit = math.sqrt(6.0 / (fan_in + fan_out))
    return jax.random.uniform(key, shape, jnp.float32, -limit, limit)


def _linear_bias(key, fan_in, shape):
    bound = 1.0 / math.sqrt(fan_in)
    return jax.random.uniform(key, shape, jnp.float32, -bound, bound)


def init_params(key):
    k1, k2, k3, k4, k5, k6 = jax.random.split(key, 6)
    return {
        "w1": _xavier_uniform(k1, 10, 64, (64, 10)),   # fc1.weight  (out, in)
        "b1": _linear_bias(k2, 10, (64, 1)),           # fc1.bias    (column)
        "w2": _xavier_uniform(k3, 64, 32, (32, 64)),   # fc2.weight
        "b2": _linear_bias(k4, 64, (32, 1)),           # fc2.bias
        "w3": _xavier_uniform(k5, 32, 1, (32, 1)),     # fc3.weight.T (column)
        "b3": _linear_bias(k6, 32, (1, 1)),            # fc3.bias    (scalar)
    }


# --------------------------------------------------------------------------
# Kernel: one batch tile per grid step.
# --------------------------------------------------------------------------
def simplenet_kernel(x_ref, w1_ref, b1_ref, w2_ref, b2_ref, w3_ref, b3_ref,
                     o_ref):
    # Transpose the x tile once (XLU; separate issue slot from stores/MXU) so
    # the batch dimension lives on lanes for the rest of the kernel.
    xt = x_ref[...].T                                                # (10, TB)

    # fc1 + relu : (64, 10) @ (10, TB) -> (64, TB)
    h1 = jnp.dot(w1_ref[...], xt, preferred_element_type=jnp.float32)
    h1 = jnp.maximum(h1 + b1_ref[...], 0.0)

    # fc2 + relu : (32, 64) @ (64, TB) -> (32, TB)
    h2 = jnp.dot(w2_ref[...], h1, preferred_element_type=jnp.float32)
    h2 = jnp.maximum(h2 + b2_ref[...], 0.0)

    # fc3 (out_features == 1): VPU multiply + sublane reduce, not an MXU pass.
    z = jnp.sum(h2 * w3_ref[...], axis=0, keepdims=True) + b3_ref[0, 0]  # (1, TB)

    # Lane-dense store: o_ref block is (1, 1, TB).
    o_ref[0] = jax.nn.sigmoid(z)


# --------------------------------------------------------------------------
# Wrapper
# --------------------------------------------------------------------------
def _round_up(n, m):
    return ((n + m - 1) // m) * m


def simplenet_forward(x, params, *, tb=512):
    b, f = x.shape
    assert f == 10, f

    # Tile size: multiple of 128 lanes, no larger than the (padded) batch.
    tb = max(128, min(_round_up(tb, 128), _round_up(b, 128)))
    b_pad = _round_up(b, tb)
    if b_pad != b:
        x = jnp.pad(x, ((0, b_pad - b), (0, 0)))
    g = b_pad // tb

    out = pl.pallas_call(
        simplenet_kernel,
        grid=(g,),
        out_shape=jax.ShapeDtypeStruct((g, 1, tb), jnp.float32),
        in_specs=[
            # x: streamed per batch tile.
            pl.BlockSpec((tb, 10), lambda i: (i, 0)),
            # Weights / biases: constant index_map -> resident across steps.
            pl.BlockSpec((64, 10), lambda i: (0, 0)),
            pl.BlockSpec((64, 1), lambda i: (0, 0)),
            pl.BlockSpec((32, 64), lambda i: (0, 0)),
            pl.BlockSpec((32, 1), lambda i: (0, 0)),
            pl.BlockSpec((32, 1), lambda i: (0, 0)),
            # b3: scalar bias in SMEM.
            pl.BlockSpec(memory_space=pltpu.MemorySpace.SMEM),
        ],
        out_specs=pl.BlockSpec((1, 1, tb), lambda i: (i, 0, 0)),
        compiler_params=pltpu.CompilerParams(
            dimension_semantics=("parallel",)),
        cost_estimate=pl.CostEstimate(
            flops=2 * b_pad * (10 * 64 + 64 * 32 + 32),
            transcendentals=b_pad,
            bytes_accessed=b_pad * (10 + 1) * 4 + 4 * (64 * 10 + 64 + 32 * 64
                                                       + 32 + 32 + 1),
        ),
    )(x, params["w1"], params["b1"], params["w2"], params["b2"],
      params["w3"], params["b3"])

    # (g, 1, tb) -> (b_pad, 1), drop padded tail rows.
    return out.reshape(b_pad, 1)[:b]


# --------------------------------------------------------------------------
# Pure-JAX reference (PyTorch semantics: y = x @ W.T + b)
# --------------------------------------------------------------------------
def simplenet_ref(x, params):
    h1 = jnp.maximum(x @ params["w1"].T + params["b1"].T, 0.0)
    h2 = jnp.maximum(h1 @ params["w2"].T + params["b2"].T, 0.0)
    return jax.nn.sigmoid(h2 @ params["w3"] + params["b3"])


if __name__ == "__main__":
    key = jax.random.PRNGKey(0)
    k_params, k_x = jax.random.split(key)
    params = init_params(k_params)

    batch = 200                 # not a multiple of the tile -> exercises padding
    x = jax.random.normal(k_x, (batch, 10), jnp.float32)

    out = jax.block_until_ready(simplenet_forward(x, params, tb=128))
    ref = simplenet_ref(x, params)

    assert out.shape == (batch, 1), out.shape
    assert jnp.allclose(out, ref, atol=1e-4, rtol=1e-4), \
        float(jnp.max(jnp.abs(out - ref)))
    print("KERNEL_OK")
</pallas_src>

<mosaic_0001>
module attributes {stable_mosaic.version = 11 : i64} {
  func.func @simplenet_kernel(%arg0: i32, %arg1: memref<128x10xf32, #tpu.memory_space<vmem>>, %arg2: memref<64x10xf32, #tpu.memory_space<vmem>>, %arg3: memref<64x1xf32, #tpu.memory_space<vmem>>, %arg4: memref<32x64xf32, #tpu.memory_space<vmem>>, %arg5: memref<32x1xf32, #tpu.memory_space<vmem>>, %arg6: memref<32x1xf32, #tpu.memory_space<vmem>>, %arg7: memref<1x1xf32, #tpu.memory_space<smem>>, %arg8: memref<1x1x128xf32, #tpu.memory_space<vmem>>) attributes {dimension_semantics = [#tpu.dimension_semantics<parallel>], iteration_bounds = array<i64: 2>, scalar_prefetch = 0 : i64, scratch_operands = 0 : i64, tpu.core_type = #tpu.core_type<tc>, window_params = [{transform_indices = @transform_0, window_bounds = array<i64: 128, 10>}, {pipeline_mode = #tpu.pipeline_mode<synchronous>, transform_indices = @transform_1, window_bounds = array<i64: 64, 10>}, {pipeline_mode = #tpu.pipeline_mode<synchronous>, transform_indices = @transform_2, window_bounds = array<i64: 64, 1>}, {pipeline_mode = #tpu.pipeline_mode<synchronous>, transform_indices = @transform_3, window_bounds = array<i64: 32, 64>}, {pipeline_mode = #tpu.pipeline_mode<synchronous>, transform_indices = @transform_4, window_bounds = array<i64: 32, 1>}, {pipeline_mode = #tpu.pipeline_mode<synchronous>, transform_indices = @transform_5, window_bounds = array<i64: 32, 1>}, {transform_indices = @transform_6, window_bounds = array<i64: 1, 1>}, {transform_indices = @transform_7, window_bounds = array<i64: 1, 1, 128>}]} {
    %c0 = arith.constant 0 : index
    %c0_0 = arith.constant 0 : index
    %0 = vector.load %arg1[%c0, %c0_0] : memref<128x10xf32, #tpu.memory_space<vmem>>, vector<128x10xf32>
    %1 = tpu.transpose %0, [1, 0] : vector<128x10xf32> -> vector<10x128xf32>
    %c0_1 = arith.constant 0 : index
    %c0_2 = arith.constant 0 : index
    %2 = vector.load %arg2[%c0_1, %c0_2] : memref<64x10xf32, #tpu.memory_space<vmem>>, vector<64x10xf32>
    %cst = arith.constant dense<0.000000e+00> : vector<64x128xf32>
    %3 = tpu.matmul %2, %1, %cst {dimension_numbers = #tpu.dot_dimension_numbers<[1], [0], [0], [1], [0, 0, 1, 1], [], []>} : vector<64x10xf32>, vector<10x128xf32>, vector<64x128xf32> -> vector<64x128xf32>
    %c0_3 = arith.constant 0 : index
    %c0_4 = arith.constant 0 : index
    %4 = vector.load %arg3[%c0_3, %c0_4] : memref<64x1xf32, #tpu.memory_space<vmem>>, vector<64x1xf32>
    %5 = vector.broadcast %4 : vector<64x1xf32> to vector<64x128xf32>
    %6 = arith.addf %3, %5 : vector<64x128xf32>
    %cst_5 = arith.constant 0.000000e+00 : f32
    %7 = vector.broadcast %cst_5 : f32 to vector<64x128xf32>
    %8 = arith.maximumf %6, %7 : vector<64x128xf32>
    %c0_6 = arith.constant 0 : index
    %c0_7 = arith.constant 0 : index
    %9 = vector.load %arg4[%c0_6, %c0_7] : memref<32x64xf32, #tpu.memory_space<vmem>>, vector<32x64xf32>
    %cst_8 = arith.constant dense<0.000000e+00> : vector<32x128xf32>
    %10 = tpu.matmul %9, %8, %cst_8 {dimension_numbers = #tpu.dot_dimension_numbers<[1], [0], [0], [1], [0, 0, 1, 1], [], []>} : vector<32x64xf32>, vector<64x128xf32>, vector<32x128xf32> -> vector<32x128xf32>
    %c0_9 = arith.constant 0 : index
    %c0_10 = arith.constant 0 : index
    %11 = vector.load %arg5[%c0_9, %c0_10] : memref<32x1xf32, #tpu.memory_space<vmem>>, vector<32x1xf32>
    %12 = vector.broadcast %11 : vector<32x1xf32> to vector<32x128xf32>
    %13 = arith.addf %10, %12 : vector<32x128xf32>
    %cst_11 = arith.constant 0.000000e+00 : f32
    %14 = vector.broadcast %cst_11 : f32 to vector<32x128xf32>
    %15 = arith.maximumf %13, %14 : vector<32x128xf32>
    %c0_12 = arith.constant 0 : index
    %c0_13 = arith.constant 0 : index
    %16 = vector.load %arg6[%c0_12, %c0_13] : memref<32x1xf32, #tpu.memory_space<vmem>>, vector<32x1xf32>
    %17 = vector.broadcast %16 : vector<32x1xf32> to vector<32x128xf32>
    %18 = arith.mulf %15, %17 : vector<32x128xf32>
    %cst_14 = arith.constant dense<0.000000e+00> : vector<128xf32>
    %19 = vector.multi_reduction <add>, %18, %cst_14 [0] : vector<32x128xf32> to vector<128xf32>
    %20 = vector.shape_cast %19 : vector<128xf32> to vector<1x128xf32>
    %c0_15 = arith.constant 0 : index
    %c0_16 = arith.constant 0 : index
    %21 = memref.load %arg7[%c0_15, %c0_16] : memref<1x1xf32, #tpu.memory_space<smem>>
    %22 = vector.broadcast %21 : f32 to vector<1x128xf32>
    %23 = arith.addf %20, %22 : vector<1x128xf32>
    %24 = arith.negf %23 : vector<1x128xf32>
    %25 = math.exp %24 : vector<1x128xf32>
    %cst_17 = arith.constant 1.000000e+00 : f32
    %26 = vector.broadcast %cst_17 : f32 to vector<1x128xf32>
    %27 = arith.addf %26, %25 : vector<1x128xf32>
    %28 = arith.divf %26, %27 : vector<1x128xf32>
    %c0_18 = arith.constant 0 : index
    %c0_19 = arith.constant 0 : index
    %c0_20 = arith.constant 0 : index
    %29 = vector.load %arg8[%c0_18, %c0_19, %c0_20] : memref<1x1x128xf32, #tpu.memory_space<vmem>>, vector<1x1x128xf32>
    %30 = vector.shape_cast %29 : vector<1x1x128xf32> to vector<1x128xf32>
    %31 = vector.shape_cast %28 : vector<1x128xf32> to vector<1x1x128xf32>
    tpu.vector_store %arg8[%c0_18, %c0_19, %c0_20], %31 {strides = array<i32>} : memref<1x1x128xf32, #tpu.memory_space<vmem>>, vector<1x1x128xf32>,
    return
  }
  func.func @transform_0(%arg0: i32) -> (i32, i32) {
    %c0_i32 = arith.constant 0 : i32
    %c0_i32_0 = arith.constant 0 : i32
    return %arg0, %c0_i32 : i32, i32
  }
  func.func @transform_1(%arg0: i32) -> (i32, i32) {
    %c0_i32 = arith.constant 0 : i32
    %c0_i32_0 = arith.constant 0 : i32
    %c0_i32_1 = arith.constant 0 : i32
    return %c0_i32, %c0_i32_0 : i32, i32
  }
  func.func @transform_2(%arg0: i32) -> (i32, i32) {
    %c0_i32 = arith.constant 0 : i32
    %c0_i32_0 = arith.constant 0 : i32
    %c0_i32_1 = arith.constant 0 : i32
    return %c0_i32, %c0_i32_0 : i32, i32
  }
  func.func @transform_3(%arg0: i32) -> (i32, i32) {
    %c0_i32 = arith.constant 0 : i32
    %c0_i32_0 = arith.constant 0 : i32
    %c0_i32_1 = arith.constant 0 : i32
    return %c0_i32, %c0_i32_0 : i32, i32
  }
  func.func @transform_4(%arg0: i32) -> (i32, i32) {
    %c0_i32 = arith.constant 0 : i32
    %c0_i32_0 = arith.constant 0 : i32
    %c0_i32_1 = arith.constant 0 : i32
    return %c0_i32, %c0_i32_0 : i32, i32
  }
  func.func @transform_5(%arg0: i32) -> (i32, i32) {
    %c0_i32 = arith.constant 0 : i32
    %c0_i32_0 = arith.constant 0 : i32
    %c0_i32_1 = arith.constant 0 : i32
    return %c0_i32, %c0_i32_0 : i32, i32
  }
  func.func @transform_6(%arg0: i32) -> (i32, i32) {
    %c0_i32 = arith.constant 0 : i32
    %c0_i32_0 = arith.constant 0 : i32
    %c0_i32_1 = arith.constant 0 : i32
    return %c0_i32, %c0_i32_0 : i32, i32
  }
  func.func @transform_7(%arg0: i32) -> (i32, i32, i32) {
    %c0_i32 = arith.constant 0 : i32
    %c0_i32_0 = arith.constant 0 : i32
    %c0_i32_1 = arith.constant 0 : i32
    return %arg0, %c0_i32, %c0_i32_0 : i32, i32, i32
  }
}

</mosaic_0001>

<llo_original>
// kernel: tpu_custom_call.1
$region0: #{tpu_custom_call.1}
  #allocation0 [shape = 'u32[]', space=smem, size = 0x4, offset = 0x4, fixed_abs, tag = 'smem constant byte address 0x4 - core index']
  #allocation1 [shape = 'u32[144,128]{1,0:T(1,128)}', space=vmem, size = 0x12000, scoped, tag = 'internal scratch']
  #allocation2 [shape = 'f32[1,1]{1,0:T(1,128)S(6)}', space=smem, size = 0x200, scoped, tag = 'scoped memory for tpu_custom_call.1']
  %s0 = inlined_call_operand.vmem [shape: f32[256,10], index: 0, kind: input, shape index: {}]
  %s1 = inlined_call_operand.vmem [shape: f32[64,10], index: 1, kind: input, shape index: {}]
  %s2 = inlined_call_operand.vmem [shape: f32[64,1], index: 2, kind: input, shape index: {}]
  %s3 = inlined_call_operand.vmem [shape: f32[32,64], index: 3, kind: input, shape index: {}]
  %s4 = inlined_call_operand.vmem [shape: f32[32,1], index: 4, kind: input, shape index: {}]
  %s5 = inlined_call_operand.vmem [shape: f32[32,1], index: 5, kind: input, shape index: {}]
  %s6 = inlined_call_operand.<no memory space> [shape: f32[1,1], index: 6, kind: input, shape index: {}]
  %s7 = inlined_call_operand.hbm [shape: f32[2,1,128], index: 7, kind: output, shape index: {}]
  %s8 = sld [smem:[#allocation0]]
  $region61: #{tpu_custom_call.1} parent=0
    _
  %s10 = ssub.s32 1, %s8
  %s11 = scalar_select 0, %s10, %s8
  %12 = sst [smem:[#allocation2]] %s6
  $region1: #{tpu_custom_call.1} parent=0
    #allocation3 [shape = 'u8[1024]{0}', space=vmem, size = 0x400, scoped, tag = 'output window, operand 0']
    #allocation4 [shape = 's32[2]{0}', space=sflag, size = 0x8, scoped, tag = 'scoped memory for tpu_custom_call.1']
    %13 = vsyncpa [#allocation4], 0
    %s14 = scalar_lea.sflag [#allocation4], 1
    %15 = vsyncpa %s14, 0
    loop: start=0, step=1, limit=4
    $region2: #{tpu_custom_call.1} parent=1 // loop_pre_header
      _
    $region3: #{tpu_custom_call.1} parent=1 // loop_header
      %s17 = sphi 0, %s21
      %p18 = scmp.ge.s32.totalorder %s17, 4
      %s27 = sphi 0, %s29
      %s30 = sphi 0, %s27
      %s31 = sphi 0, %s30
      %s47 = sphi 0, %s31
      %s51 = sphi 0, %s51
      %s53 = sphi 0, %s51
      %s54 = sphi 0, %s53
      %s68 = sphi 0, %s54
      %s72 = sphi 0, %s72
      %s74 = sphi 0, %s72
      %s75 = sphi 0, %s74
      %s89 = sphi 0, %s75
      %s93 = sphi 0, %s93
      %s95 = sphi 0, %s93
      %s96 = sphi 0, %s95
      %s110 = sphi 0, %s96
      %s114 = sphi 0, %s114
      %s116 = sphi 0, %s114
      %s117 = sphi 0, %s116
      %s131 = sphi 0, %s117
      %s135 = sphi 0, %s135
      %s137 = sphi 0, %s135
      %s138 = sphi 0, %s137
      %s152 = sphi 0, %s138
      %s156 = sphi 0, %s156
      %s158 = sphi 0, %s156
      %s159 = sphi 0, %s158
      %s173 = sphi 0, %s159
      %s179 = sphi 0, %s181
      %s182 = sphi 0, %s179
      %s183 = sphi 0, %s182
      %s199 = sphi 0, %s183
    $region4: #{tpu_custom_call.1} parent=1 // loop_header_branch
      %20 = sbr.rel (%p18) target = $region8
    $region5: #{tpu_custom_call.1} parent=1 // loop_body
      %s22 = ssub.s32 %s17, 1
      %s23 = ssub.s32 %s17, 2
      %s24 = sadd.s32 %s17, 1
      %s25 = ssub.s32 %s17, %s24
      %p26 = scmp.eq.s32.totalorder %s25, 0
      %s28 = sadd.s32 %s27, 1
      %s29 = scalar_select %p26, %s27, %s28
      %p32 = pneg %p26
      %p33 = scmp.eq.s32.totalorder %s17, 1
      %p34 = por %p32, %p33
      %p35 = scmp.ne.s32.totalorder %s27, %s30
      %p36 = scmp.eq.s32.totalorder %s17, 0
      %p37 = por %p35, %p36
      %p38 = scmp.ne.s32.totalorder %s27, %s30
      %p39 = scmp.eq.s32.totalorder %s22, 1
      %p40 = por %p38, %p39
      %p41 = scmp.ne.s32.totalorder %s30, %s31
      %p42 = scmp.eq.s32.totalorder %s22, 0
      %p43 = por %p41, %p42
      %p44 = scmp.ne.s32.totalorder %s30, %s31
      %p45 = scmp.eq.s32.totalorder %s23, 1
      %p46 = por %p44, %p45
      %p48 = scmp.ne.s32.totalorder %s31, %s47
      %p49 = scmp.eq.s32.totalorder %s23, 0
      %p50 = por %p48, %p49
      %s52 = sadd.s32 %s51, 1
      %p55 = scmp.eq.s32.totalorder %s17, 1
      %p56 = scmp.ne.s32.totalorder %s51, %s53
      %p57 = scmp.eq.s32.totalorder %s17, 0
      %p58 = por %p56, %p57
      %p59 = scmp.ne.s32.totalorder %s51, %s53
      %p60 = scmp.eq.s32.totalorder %s22, 1
      %p61 = por %p59, %p60
      %p62 = scmp.ne.s32.totalorder %s53, %s54
      %p63 = scmp.eq.s32.totalorder %s22, 0
      %p64 = por %p62, %p63
      %p65 = scmp.ne.s32.totalorder %s53, %s54
      %p66 = scmp.eq.s32.totalorder %s23, 1
      %p67 = por %p65, %p66
      %p69 = scmp.ne.s32.totalorder %s54, %s68
      %p70 = scmp.eq.s32.totalorder %s23, 0
      %p71 = por %p69, %p70
      %s73 = sadd.s32 %s72, 1
      %p76 = scmp.eq.s32.totalorder %s17, 1
      %p77 = scmp.ne.s32.totalorder %s72, %s74
      %p78 = scmp.eq.s32.totalorder %s17, 0
      %p79 = por %p77, %p78
      %p80 = scmp.ne.s32.totalorder %s72, %s74
      %p81 = scmp.eq.s32.totalorder %s22, 1
      %p82 = por %p80, %p81
      %p83 = scmp.ne.s32.totalorder %s74, %s75
      %p84 = scmp.eq.s32.totalorder %s22, 0
      %p85 = por %p83, %p84
      %p86 = scmp.ne.s32.totalorder %s74, %s75
      %p87 = scmp.eq.s32.totalorder %s23, 1
      %p88 = por %p86, %p87
      %p90 = scmp.ne.s32.totalorder %s75, %s89
      %p91 = scmp.eq.s32.totalorder %s23, 0
      %p92 = por %p90, %p91
      %s94 = sadd.s32 %s93, 1
      %p97 = scmp.eq.s32.totalorder %s17, 1
      %p98 = scmp.ne.s32.totalorder %s93, %s95
      %p99 = scmp.eq.s32.totalorder %s17, 0
      %p100 = por %p98, %p99
      %p101 = scmp.ne.s32.totalorder %s93, %s95
      %p102 = scmp.eq.s32.totalorder %s22, 1
      %p103 = por %p101, %p102
      %p104 = scmp.ne.s32.totalorder %s95, %s96
      %p105 = scmp.eq.s32.totalorder %s22, 0
      %p106 = por %p104, %p105
      %p107 = scmp.ne.s32.totalorder %s95, %s96
      %p108 = scmp.eq.s32.totalorder %s23, 1
      %p109 = por %p107, %p108
      %p111 = scmp.ne.s32.totalorder %s96, %s110
      %p112 = scmp.eq.s32.totalorder %s23, 0
      %p113 = por %p111, %p112
      %s115 = sadd.s32 %s114, 1
      %p118 = scmp.eq.s32.totalorder %s17, 1
      %p119 = scmp.ne.s32.totalorder %s114, %s116
      %p120 = scmp.eq.s32.totalorder %s17, 0
      %p121 = por %p119, %p120
      %p122 = scmp.ne.s32.totalorder %s114, %s116
      %p123 = scmp.eq.s32.totalorder %s22, 1
      %p124 = por %p122, %p123
      %p125 = scmp.ne.s32.totalorder %s116, %s117
      %p126 = scmp.eq.s32.totalorder %s22, 0
      %p127 = por %p125, %p126
      %p128 = scmp.ne.s32.totalorder %s116, %s117
      %p129 = scmp.eq.s32.totalorder %s23, 1
      %p130 = por %p128, %p129
      %p132 = scmp.ne.s32.totalorder %s117, %s131
      %p133 = scmp.eq.s32.totalorder %s23, 0
      %p134 = por %p132, %p133
      %s136 = sadd.s32 %s135, 1
      %p139 = scmp.eq.s32.totalorder %s17, 1
      %p140 = scmp.ne.s32.totalorder %s135, %s137
      %p141 = scmp.eq.s32.totalorder %s17, 0
      %p142 = por %p140, %p141
      %p143 = scmp.ne.s32.totalorder %s135, %s137
      %p144 = scmp.eq.s32.totalorder %s22, 1
      %p145 = por %p143, %p144
      %p146 = scmp.ne.s32.totalorder %s137, %s138
      %p147 = scmp.eq.s32.totalorder %s22, 0
      %p148 = por %p146, %p147
      %p149 = scmp.ne.s32.totalorder %s137, %s138
      %p150 = scmp.eq.s32.totalorder %s23, 1
      %p151 = por %p149, %p150
      %p153 = scmp.ne.s32.totalorder %s138, %s152
      %p154 = scmp.eq.s32.totalorder %s23, 0
      %p155 = por %p153, %p154
      %s157 = sadd.s32 %s156, 1
      %p160 = scmp.eq.s32.totalorder %s17, 1
      %p161 = scmp.ne.s32.totalorder %s156, %s158
      %p162 = scmp.eq.s32.totalorder %s17, 0
      %p163 = por %p161, %p162
      %p164 = scmp.ne.s32.totalorder %s156, %s158
      %p165 = scmp.eq.s32.totalorder %s22, 1
      %p166 = por %p164, %p165
      %p167 = scmp.ne.s32.totalorder %s158, %s159
      %p168 = scmp.eq.s32.totalorder %s22, 0
      %p169 = por %p167, %p168
      %p170 = scmp.ne.s32.totalorder %s158, %s159
      %p171 = scmp.eq.s32.totalorder %s23, 1
      %p172 = por %p170, %p171
      %p174 = scmp.ne.s32.totalorder %s159, %s173
      %p175 = scmp.eq.s32.totalorder %s23, 0
      %p176 = por %p174, %p175
      %s177 = ssub.s32 %s17, %s24
      %p178 = scmp.eq.s32.totalorder %s177, 0
      %s180 = sadd.s32 %s179, 1
      %s181 = scalar_select %p178, %s179, %s180
      %p184 = pneg %p178
      %p185 = scmp.eq.s32.totalorder %s17, 1
      %p186 = por %p184, %p185
      %p187 = scmp.ne.s32.totalorder %s179, %s182
      %p188 = scmp.eq.s32.totalorder %s17, 0
      %p189 = por %p187, %p188
      %p190 = scmp.ne.s32.totalorder %s179, %s182
      %p191 = scmp.eq.s32.totalorder %s22, 1
      %p192 = por %p190, %p191
      %p193 = scmp.ne.s32.totalorder %s182, %s183
      %p194 = scmp.eq.s32.totalorder %s22, 0
      %p195 = por %p193, %p194
      %p196 = scmp.ne.s32.totalorder %s182, %s183
      %p197 = scmp.eq.s32.totalorder %s23, 1
      %p198 = por %p196, %p197
      %p200 = scmp.ne.s32.totalorder %s183, %s199
      %p201 = scmp.eq.s32.totalorder %s23, 0
      %p202 = por %p200, %p201
      %p203 = scmp.le.s32.totalorder 1, %s17
      %p204 = scmp.lt.s32.totalorder %s17, 3
      %p205 = pnand %p203, %p204
      %p206 = pneg %p205
      // Predicated region
      $region9: #{tpu_custom_call.1} parent=5 // pred_check
        _
      $region10: #{tpu_custom_call.1} parent=5 // pred_check_branch
        %208 = sbr.rel (%p205) target = $region12
      $region11: #{tpu_custom_call.1} parent=5 // pred_region
        %s209 = ssub.s32 %s17, 1
        // Predicated region
        $region13: #{tpu_custom_call.1} parent=11 // pred_check
          %p210 = pneg %p64
        $region14: #{tpu_custom_call.1} parent=11 // pred_check_branch
          %212 = sbr.rel (%p210) target = $region16
        $region15: #{tpu_custom_call.1} parent=11 // pred_region
          _
        $region16: #{tpu_custom_call.1} parent=11 // pred_fallthru
          _
        // Predicated region
        $region17: #{tpu_custom_call.1} parent=11 // pred_check
          %p213 = pneg %p85
        $region18: #{tpu_custom_call.1} parent=11 // pred_check_branch
          %215 = sbr.rel (%p213) target = $region20
        $region19: #{tpu_custom_call.1} parent=11 // pred_region
          _
        $region20: #{tpu_custom_call.1} parent=11 // pred_fallthru
          _
        // Predicated region
        $region21: #{tpu_custom_call.1} parent=11 // pred_check
          %p216 = pneg %p106
        $region22: #{tpu_custom_call.1} parent=11 // pred_check_branch
          %218 = sbr.rel (%p216) target = $region24
        $region23: #{tpu_custom_call.1} parent=11 // pred_region
          _
        $region24: #{tpu_custom_call.1} parent=11 // pred_fallthru
          _
        // Predicated region
        $region25: #{tpu_custom_call.1} parent=11 // pred_check
          %p219 = pneg %p127
        $region26: #{tpu_custom_call.1} parent=11 // pred_check_branch
          %221 = sbr.rel (%p219) target = $region28
        $region27: #{tpu_custom_call.1} parent=11 // pred_region
          _
        $region28: #{tpu_custom_call.1} parent=11 // pred_fallthru
          _
        // Predicated region
        $region29: #{tpu_custom_call.1} parent=11 // pred_check
          %p222 = pneg %p148
        $region30: #{tpu_custom_call.1} parent=11 // pred_check_branch
          %224 = sbr.rel (%p222) target = $region32
        $region31: #{tpu_custom_call.1} parent=11 // pred_region
          _
        $region32: #{tpu_custom_call.1} parent=11 // pred_fallthru
          _
        // Predicated region
        $region33: #{tpu_custom_call.1} parent=11 // pred_check
          %p225 = pneg %p169
        $region34: #{tpu_custom_call.1} parent=11 // pred_check_branch
          %227 = sbr.rel (%p225) target = $region36
        $region35: #{tpu_custom_call.1} parent=11 // pred_region
          _
        $region36: #{tpu_custom_call.1} parent=11 // pred_fallthru
          _
      $region12: #{tpu_custom_call.1} parent=5 // pred_fallthru
        _
      %p228 = scmp.lt.s32.totalorder %s17, 2
      // Predicated region
      $region37: #{tpu_custom_call.1} parent=5 // pred_check
        %p229 = pneg %p228
      $region38: #{tpu_custom_call.1} parent=5 // pred_check_branch
        %231 = sbr.rel (%p229) target = $region40
      $region39: #{tpu_custom_call.1} parent=5 // pred_region
        // Predicated region
        $region41: #{tpu_custom_call.1} parent=39 // pred_check
          %p232 = pneg %p37
        $region42: #{tpu_custom_call.1} parent=39 // pred_check_branch
          %234 = sbr.rel (%p232) target = $region44
        $region43: #{tpu_custom_call.1} parent=39 // pred_region
          %s235 = smul.u32 16, %s17
          %p236 = scmp.lt.s32.totalorder %s235, 31
          %s237 = scalar_select %p236, %s235, 31
          %s238 = smul.addr %s237, 8
          %s239 = scalar_lea.vmem %s0, %s238
          %s240 = smul.u32 16, %s17
        $region44: #{tpu_custom_call.1} parent=39 // pred_fallthru
          _
      $region40: #{tpu_custom_call.1} parent=5 // pred_fallthru
        _
      %p241 = scmp.le.s32.totalorder 1, %s17
      %p242 = scmp.lt.s32.totalorder %s17, 3
      %p243 = pnand %p241, %p242
      %p244 = pneg %p243
      // Predicated region
      $region45: #{tpu_custom_call.1} parent=5 // pred_check
        _
      $region46: #{tpu_custom_call.1} parent=5 // pred_check_branch
        %246 = sbr.rel (%p243) target = $region48
      $region47: #{tpu_custom_call.1} parent=5 // pred_region
        %s247 = ssub.s32 %s17, 1
        %s248 = smul.u32 16, %s22
        %p249 = scmp.lt.s32.totalorder %s248, 31
        %s250 = scalar_select %p249, %s248, 31
        %s251 = smul.addr %s250, 8
        %s252 = scalar_lea.vmem %s0, %s251
        %p253 = pneg %p43
        %p254 = pneg %p40
        %p255 = pneg %p64
        %p256 = pneg %p61
        %p257 = pneg %p85
        %p258 = pneg %p82
        %p259 = pneg %p106
        %p260 = pneg %p103
        %p261 = pneg %p127
        %p262 = pneg %p124
        %p263 = pneg %p148
        %p264 = pneg %p145
        %p265 = pneg %p169
        %p266 = pneg %p166
        %p267 = pneg %p195
        %p268 = pneg %p192
        %s269 = sand.u32 %s182, 1
        %s270 = scalar_lea.sflag [#allocation4], %s269
        %s271 = sand.u32 %s182, 1
        %s272 = scalar_lea.vmem [#allocation3], %s271
        %s273 = smul.u32 16, %s22
        %p274 = scmp.lt.s32.totalorder %s273, 31
        %s275 = scalar_select %p274, %s273, 31
        %s276 = smul.addr %s275, 8
        %s277 = scalar_lea.vmem %s0, %s276
        %s278 = smul.u32 16, %s22
        %v279 = vld [vmem:[%s277] sm:$0xff]
        %v280 = vld [vmem:[%s277 + $0x8] sm:$0xff]
        %v281 = vld [vmem:[%s277 + $0x10] sm:$0xff]
        %v282 = vld [vmem:[%s277 + $0x18] sm:$0xff]
        %v283 = vld [vmem:[%s277 + $0x20] sm:$0xff]
        %v284 = vld [vmem:[%s277 + $0x28] sm:$0xff]
        %v285 = vld [vmem:[%s277 + $0x30] sm:$0xff]
        %v286 = vld [vmem:[%s277 + $0x38] sm:$0xff]
        %v287 = vld [vmem:[%s277 + $0x40] sm:$0xff]
        %v288 = vld [vmem:[%s277 + $0x48] sm:$0xff]
        %v289 = vld [vmem:[%s277 + $0x50] sm:$0xff]
        %v290 = vld [vmem:[%s277 + $0x58] sm:$0xff]
        %v291 = vld [vmem:[%s277 + $0x60] sm:$0xff]
        %v292 = vld [vmem:[%s277 + $0x68] sm:$0xff]
        %v293 = vld [vmem:[%s277 + $0x70] sm:$0xff]
        %v294 = vld [vmem:[%s277 + $0x78] sm:$0xff]
        %v295 = vld [vmem:[%s1] sm:$0xff]
        %v296 = vld [vmem:[%s1 + $0x8] sm:$0xff]
        %v297 = vld [vmem:[%s1 + $0x10] sm:$0xff]
        %v298 = vld [vmem:[%s1 + $0x18] sm:$0xff]
        %v299 = vld [vmem:[%s1 + $0x20] sm:$0xff]
        %v300 = vld [vmem:[%s1 + $0x28] sm:$0xff]
        %v301 = vld [vmem:[%s1 + $0x30] sm:$0xff]
        %v302 = vld [vmem:[%s1 + $0x38] sm:$0xff]
        %v303 = vld [vmem:[%s2] sm:$0xff]
        %v304 = vld [vmem:[%s2 + $0x8] sm:$0xff]
        %v305 = vld [vmem:[%s2 + $0x10] sm:$0xff]
        %v306 = vld [vmem:[%s2 + $0x18] sm:$0xff]
        %v307 = vld [vmem:[%s2 + $0x20] sm:$0xff]
        %v308 = vld [vmem:[%s2 + $0x28] sm:$0xff]
        %v309 = vld [vmem:[%s2 + $0x30] sm:$0xff]
        %v310 = vld [vmem:[%s2 + $0x38] sm:$0xff]
        %312 = vset.pattern.permute.xlu0 0
        %313 = vperm.xlu0 %312, %v303
        %v314 = vpop.permute.xlu0 %313
        %317 = vset.pattern.permute.xlu0 0
        %318 = vperm.xlu0 %317, %v304
        %v319 = vpop.permute.xlu0 %318
        %322 = vset.pattern.permute.xlu0 0
        %323 = vperm.xlu0 %322, %v305
        %v324 = vpop.permute.xlu0 %323
        %327 = vset.pattern.permute.xlu0 0
        %328 = vperm.xlu0 %327, %v306
        %v329 = vpop.permute.xlu0 %328
        %332 = vset.pattern.permute.xlu0 0
        %333 = vperm.xlu0 %332, %v307
        %v334 = vpop.permute.xlu0 %333
        %337 = vset.pattern.permute.xlu0 0
        %338 = vperm.xlu0 %337, %v308
        %v339 = vpop.permute.xlu0 %338
        %342 = vset.pattern.permute.xlu0 0
        %343 = vperm.xlu0 %342, %v309
        %v344 = vpop.permute.xlu0 %343
        %347 = vset.pattern.permute.xlu0 0
        %348 = vperm.xlu0 %347, %v310
        %v349 = vpop.permute.xlu0 %348
        %vm351 = vcmask 80896
        %v353 = vsel %vm351, %v295, 0
        %v356 = vsel %vm351, %v296, 0
        %v359 = vsel %vm351, %v297, 0
        %v362 = vsel %vm351, %v298, 0
        %v365 = vsel %vm351, %v299, 0
        %v368 = vsel %vm351, %v300, 0
        %v371 = vsel %vm351, %v301, 0
        %v374 = vsel %vm351, %v302, 0
        %v377 = vsel %vm351, %v279, 0
        %v380 = vsel %vm351, %v280, 0
        %v383 = vsel %vm351, %v281, 0
        %v386 = vsel %vm351, %v282, 0
        %v389 = vsel %vm351, %v283, 0
        %v392 = vsel %vm351, %v284, 0
        %v395 = vsel %vm351, %v285, 0
        %v398 = vsel %vm351, %v286, 0
        %v401 = vsel %vm351, %v287, 0
        %v404 = vsel %vm351, %v288, 0
        %v407 = vsel %vm351, %v289, 0
        %v410 = vsel %vm351, %v290, 0
        %v413 = vsel %vm351, %v291, 0
        %v416 = vsel %vm351, %v292, 0
        %v419 = vsel %vm351, %v293, 0
        %v422 = vsel %vm351, %v294, 0
        %424 = vmatprep.subr.mxu0 0.0
        %425 = vmatpush1.xpose.msra.mxu0 %v422
        %426 = vmatprep.subr.mxu0 0.0
        %427 = vmatpush1.xpose.msra.mxu0 %v419
        %428 = vmatprep.subr.mxu0 0.0
        %429 = vmatpush1.xpose.msra.mxu0 %v416
        %430 = vmatprep.subr.mxu0 0.0
        %431 = vmatpush1.xpose.msra.mxu0 %v413
        %432 = vmatprep.subr.mxu0 0.0
        %433 = vmatpush1.xpose.msra.mxu0 %v410
        %434 = vmatprep.subr.mxu0 0.0
        %435 = vmatpush1.xpose.msra.mxu0 %v407
        %436 = vmatprep.subr.mxu0 0.0
        %437 = vmatpush1.xpose.msra.mxu0 %v404
        %438 = vmatprep.subr.mxu0 0.0
        %439 = vmatpush1.xpose.msra.mxu0 %v401
        %440 = vmatprep.subr.mxu0 0.0
        %441 = vmatpush1.xpose.msra.mxu0 %v398
        %442 = vmatprep.subr.mxu0 0.0
        %443 = vmatpush1.xpose.msra.mxu0 %v395
        %444 = vmatprep.subr.mxu0 0.0
        %445 = vmatpush1.xpose.msra.mxu0 %v392
        %446 = vmatprep.subr.mxu0 0.0
        %447 = vmatpush1.xpose.msra.mxu0 %v389
        %448 = vmatprep.subr.mxu0 0.0
        %449 = vmatpush1.xpose.msra.mxu0 %v386
        %450 = vmatprep.subr.mxu0 0.0
        %451 = vmatpush1.xpose.msra.mxu0 %v383
        %452 = vmatprep.subr.mxu0 0.0
        %453 = vmatpush1.xpose.msra.mxu0 %v380
        %454 = vmatprep.subr.mxu0 0.0
        %455 = vmatpush1.xpose.msra.mxu0 %v377
        %456 = vmatprep.subr.mxu0 0.0
        %457 = vmatpush2.xpose.msra.mxu0 0.0
        %458 = vmatprep.subr.mxu0 0.0
        %459 = vmatpush2.xpose.msra.mxu0 0.0
        %460 = vmatprep.subr.mxu0 0.0
        %461 = vmatpush2.xpose.msra.mxu0 0.0
        %462 = vmatprep.subr.mxu0 0.0
        %463 = vmatpush2.xpose.msra.mxu0 0.0
        %464 = vmatprep.subr.mxu0 0.0
        %465 = vmatpush2.xpose.msra.mxu0 0.0
        %466 = vmatprep.subr.mxu0 0.0
        %467 = vmatpush2.xpose.msra.mxu0 0.0
        %468 = vmatprep.subr.mxu0 0.0
        %469 = vmatpush2.xpose.msra.mxu0 0.0
        %470 = vmatprep.subr.mxu0 0.0
        %471 = vmatpush2.xpose.msra.mxu0 0.0
        %472 = vmatprep.subr.mxu0 0.0
        %473 = vmatpush2.xpose.msra.mxu0 0.0
        %474 = vmatprep.subr.mxu0 0.0
        %475 = vmatpush2.xpose.msra.mxu0 0.0
        %476 = vmatprep.subr.mxu0 0.0
        %477 = vmatpush2.xpose.msra.mxu0 0.0
        %478 = vmatprep.subr.mxu0 0.0
        %479 = vmatpush2.xpose.msra.mxu0 0.0
        %480 = vmatprep.subr.mxu0 0.0
        %481 = vmatpush2.xpose.msra.mxu0 0.0
        %482 = vmatprep.subr.mxu0 0.0
        %483 = vmatpush2.xpose.msra.mxu0 0.0
        %484 = vmatprep.subr.mxu0 0.0
        %485 = vmatpush2.xpose.msra.mxu0 0.0
        %486 = vmatprep.subr.mxu0 0.0
        %487 = vmatpush2.xpose.msra.mxu0 0.0
        %488 = vmatprep.mubr.f32.mxu0 0.0
        %489 = vmatmul.mubr.f32.gmra.mxu0 %v353
        %v490 = vpop.f32.mrf.mxu0
        %v491 = vadd.f32 %v314, %v490
        %v492 = vpop.f32.mrf.mxu0
        %493 = vmatprep.mubr.f32.mxu0 0.0
        %494 = vmatmul.mubr.f32.gmra.mxu0 %v356
        %v495 = vpop.f32.mrf.mxu0
        %v496 = vadd.f32 %v319, %v495
        %v497 = vpop.f32.mrf.mxu0
        %498 = vmatprep.mubr.f32.mxu0 0.0
        %499 = vmatmul.mubr.f32.gmra.mxu0 %v359
        %v500 = vpop.f32.mrf.mxu0
        %v501 = vadd.f32 %v324, %v500
        %v502 = vpop.f32.mrf.mxu0
        %503 = vmatprep.mubr.f32.mxu0 0.0
        %504 = vmatmul.mubr.f32.gmra.mxu0 %v362
        %v505 = vpop.f32.mrf.mxu0
        %v506 = vadd.f32 %v329, %v505
        %v507 = vpop.f32.mrf.mxu0
        %508 = vmatprep.mubr.f32.mxu0 0.0
        %509 = vmatmul.mubr.f32.gmra.mxu0 %v365
        %v510 = vpop.f32.mrf.mxu0
        %v511 = vadd.f32 %v334, %v510
        %v512 = vpop.f32.mrf.mxu0
        %513 = vmatprep.mubr.f32.mxu0 0.0
        %514 = vmatmul.mubr.f32.gmra.mxu0 %v368
        %v515 = vpop.f32.mrf.mxu0
        %v516 = vadd.f32 %v339, %v515
        %v517 = vpop.f32.mrf.mxu0
        %518 = vmatprep.mubr.f32.mxu0 0.0
        %519 = vmatmul.mubr.f32.gmra.mxu0 %v371
        %v520 = vpop.f32.mrf.mxu0
        %v521 = vadd.f32 %v344, %v520
        %v522 = vpop.f32.mrf.mxu0
        %523 = vmatprep.mubr.f32.mxu0 0.0
        %524 = vmatmul.mubr.f32.gmra.mxu0 %v374
        %v525 = vpop.f32.mrf.mxu0
        %v526 = vadd.f32 %v349, %v525
        %v527 = vpop.f32.mrf.mxu0
        %528 = vdwg.mxu0
        %v529 = vmax.f32 %v491, 0.0
        %v530 = vmax.f32 %v496, 0.0
        %v531 = vmax.f32 %v501, 0.0
        %v532 = vmax.f32 %v506, 0.0
        %v533 = vmax.f32 %v511, 0.0
        %v534 = vmax.f32 %v516, 0.0
        %v535 = vmax.f32 %v521, 0.0
        %v536 = vmax.f32 %v526, 0.0
        %v537 = vld [vmem:[%s3] sm:$0xff]
        %v538 = vld [vmem:[%s3 + $0x8] sm:$0xff]
        %v539 = vld [vmem:[%s3 + $0x10] sm:$0xff]
        %v540 = vld [vmem:[%s3 + $0x18] sm:$0xff]
        %v541 = vld [vmem:[%s4] sm:$0xff]
        %v542 = vld [vmem:[%s4 + $0x8] sm:$0xff]
        %v543 = vld [vmem:[%s4 + $0x10] sm:$0xff]
        %v544 = vld [vmem:[%s4 + $0x18] sm:$0xff]
        %546 = vset.pattern.permute.xlu0 0
        %547 = vperm.xlu0 %546, %v541
        %v548 = vpop.permute.xlu0 %547
        %551 = vset.pattern.permute.xlu0 0
        %552 = vperm.xlu0 %551, %v542
        %v553 = vpop.permute.xlu0 %552
        %556 = vset.pattern.permute.xlu0 0
        %557 = vperm.xlu0 %556, %v543
        %v558 = vpop.permute.xlu0 %557
        %561 = vset.pattern.permute.xlu0 0
        %562 = vperm.xlu0 %561, %v544
        %v563 = vpop.permute.xlu0 %562
        %vm565 = vcmask 523264
        %v567 = vsel %vm565, %v537, 0
        %v570 = vsel %vm565, %v538, 0
        %v573 = vsel %vm565, %v539, 0
        %v576 = vsel %vm565, %v540, 0
        %578 = vmatprep.subr.mxu0 0.0
        %579 = vmatpush1.msra.mxu0 0.0
        %580 = vmatprep.subr.mxu0 0.0
        %581 = vmatpush1.msra.mxu0 0.0
        %582 = vmatprep.subr.mxu0 0.0
        %583 = vmatpush1.msra.mxu0 0.0
        %584 = vmatprep.subr.mxu0 0.0
        %585 = vmatpush1.msra.mxu0 0.0
        %586 = vmatprep.subr.mxu0 0.0
        %587 = vmatpush1.msra.mxu0 0.0
        %588 = vmatprep.subr.mxu0 0.0
        %589 = vmatpush1.msra.mxu0 0.0
        %590 = vmatprep.subr.mxu0 0.0
        %591 = vmatpush1.msra.mxu0 0.0
        %592 = vmatprep.subr.mxu0 0.0
        %593 = vmatpush1.msra.mxu0 0.0
        %594 = vmatprep.subr.mxu0 0.0
        %595 = vmatpush1.msra.mxu0 %v536
        %596 = vmatprep.subr.mxu0 0.0
        %597 = vmatpush1.msra.mxu0 %v535
        %598 = vmatprep.subr.mxu0 0.0
        %599 = vmatpush1.msra.mxu0 %v534
        %600 = vmatprep.subr.mxu0 0.0
        %601 = vmatpush1.msra.mxu0 %v533
        %602 = vmatprep.subr.mxu0 0.0
        %603 = vmatpush1.msra.mxu0 %v532
        %604 = vmatprep.subr.mxu0 0.0
        %605 = vmatpush1.msra.mxu0 %v531
        %606 = vmatprep.subr.mxu0 0.0
        %607 = vmatpush1.msra.mxu0 %v530
        %608 = vmatprep.subr.mxu0 0.0
        %609 = vmatpush1.msra.mxu0 %v529
        %610 = vmatprep.subr.mxu0 0.0
        %611 = vmatpush2.msra.mxu0 0.0
        %612 = vmatprep.subr.mxu0 0.0
        %613 = vmatpush2.msra.mxu0 0.0
        %614 = vmatprep.subr.mxu0 0.0
        %615 = vmatpush2.msra.mxu0 0.0
        %616 = vmatprep.subr.mxu0 0.0
        %617 = vmatpush2.msra.mxu0 0.0
        %618 = vmatprep.subr.mxu0 0.0
        %619 = vmatpush2.msra.mxu0 0.0
        %620 = vmatprep.subr.mxu0 0.0
        %621 = vmatpush2.msra.mxu0 0.0
        %622 = vmatprep.subr.mxu0 0.0
        %623 = vmatpush2.msra.mxu0 0.0
        %624 = vmatprep.subr.mxu0 0.0
        %625 = vmatpush2.msra.mxu0 0.0
        %626 = vmatprep.subr.mxu0 0.0
        %627 = vmatpush2.msra.mxu0 0.0
        %628 = vmatprep.subr.mxu0 0.0
        %629 = vmatpush2.msra.mxu0 0.0
        %630 = vmatprep.subr.mxu0 0.0
        %631 = vmatpush2.msra.mxu0 0.0
        %632 = vmatprep.subr.mxu0 0.0
        %633 = vmatpush2.msra.mxu0 0.0
        %634 = vmatprep.subr.mxu0 0.0
        %635 = vmatpush2.msra.mxu0 0.0
        %636 = vmatprep.subr.mxu0 0.0
        %637 = vmatpush2.msra.mxu0 0.0
        %638 = vmatprep.subr.mxu0 0.0
        %639 = vmatpush2.msra.mxu0 0.0
        %640 = vmatprep.subr.mxu0 0.0
        %641 = vmatpush2.msra.mxu0 0.0
        %642 = vmatprep.mubr.f32.mxu0 0.0
        %643 = vmatmul.mubr.f32.gmra.mxu0 %v567
        %v644 = vpop.f32.mrf.mxu0
        %v645 = vadd.f32 %v548, %v644
        %v646 = vpop.f32.mrf.mxu0
        %647 = vmatprep.mubr.f32.mxu0 0.0
        %648 = vmatmul.mubr.f32.gmra.mxu0 %v570
        %v649 = vpop.f32.mrf.mxu0
        %v650 = vadd.f32 %v553, %v649
        %v651 = vpop.f32.mrf.mxu0
        %652 = vmatprep.mubr.f32.mxu0 0.0
        %653 = vmatmul.mubr.f32.gmra.mxu0 %v573
        %v654 = vpop.f32.mrf.mxu0
        %v655 = vadd.f32 %v558, %v654
        %v656 = vpop.f32.mrf.mxu0
        %657 = vmatprep.mubr.f32.mxu0 0.0
        %658 = vmatmul.mubr.f32.gmra.mxu0 %v576
        %v659 = vpop.f32.mrf.mxu0
        %v660 = vadd.f32 %v563, %v659
        %v661 = vpop.f32.mrf.mxu0
        %662 = vdwg.mxu0
        %v663 = vmax.f32 %v645, 0.0
        %v664 = vmax.f32 %v650, 0.0
        %v665 = vmax.f32 %v655, 0.0
        %v666 = vmax.f32 %v660, 0.0
        %v667 = vld [vmem:[%s5] sm:$0xff]
        %v668 = vld [vmem:[%s5 + $0x8] sm:$0xff]
        %v669 = vld [vmem:[%s5 + $0x10] sm:$0xff]
        %v670 = vld [vmem:[%s5 + $0x18] sm:$0xff]
        %672 = vset.pattern.permute.xlu0 0
        %673 = vperm.xlu0 %672, %v667
        %v674 = vpop.permute.xlu0 %673
        %677 = vset.pattern.permute.xlu0 0
        %678 = vperm.xlu0 %677, %v668
        %v679 = vpop.permute.xlu0 %678
        %682 = vset.pattern.permute.xlu0 0
        %683 = vperm.xlu0 %682, %v669
        %v684 = vpop.permute.xlu0 %683
        %687 = vset.pattern.permute.xlu0 0
        %688 = vperm.xlu0 %687, %v670
        %v689 = vpop.permute.xlu0 %688
        %v691 = vmul.f32 %v663, %v674
        %v692 = vmul.f32 %v664, %v679
        %v693 = vmul.f32 %v665, %v684
        %v694 = vmul.f32 %v666, %v689
        %v695 = vadd.f32 %v691, %v692
        %v696 = vadd.f32 %v695, %v693
        %v697 = vadd.f32 %v696, %v694
        %v698 = vrot.slane %v697, 4
        %v699 = vadd.f32 %v697, %v698
        %v700 = vrot.slane %v699, 2
        %v701 = vadd.f32 %v699, %v700
        %v702 = vrot.slane %v701, 1
        %v703 = vadd.f32 %v701, %v702
        %s704 = sld [smem:[#allocation2]]
        %v705 = vstv %s704
        %v706 = vadd.f32 %v703, %v705
        %v707 = vxor.u32 %v706, 2147483648
        %v708 = vmul.f32 %v707, 1.442695
        %v709 = vpow.pop %v708
        %v710 = vadd.f32 %v709, 1.0
        %v711 = vrcp.pop %v710
        %v712 = vmul.f32 1.0, %v711
        %713 = vst [vmem:[%s272] sm:$0x1] %v712
        %s714 = sand.u32 %s182, 1
        %s715 = scalar_lea.sflag [#allocation4], %s714
        %s716 = sand.u32 %s182, 1
        %s717 = scalar_lea.vmem [#allocation3], %s716
        // Predicated region
        $region49: #{tpu_custom_call.1} parent=47 // pred_check
          %p718 = pneg %p192
        $region50: #{tpu_custom_call.1} parent=47 // pred_check_branch
          %720 = sbr.rel (%p718) target = $region52
        $region51: #{tpu_custom_call.1} parent=47 // pred_region
          %s722 = ssub.s32 16, 16
          %723 = vsyncadd %s715, %s722
          %s724 = smul.addr %s22, 16
          %s725 = scalar_lea.hbm %s7, %s724
          %s727 = sshll.u32 %s717, 4
          %s728 = int_to_ptr.vmem [resolvable:$true] %s727
          %730 = dma.vmem_to_hbm [thread:$0]  %s728, 16, %s725, %s715
        $region52: #{tpu_custom_call.1} parent=47 // pred_fallthru
          _
      $region48: #{tpu_custom_call.1} parent=5 // pred_fallthru
        _
      %p731 = scmp.le.s32.totalorder 2, %s17
      // Predicated region
      $region53: #{tpu_custom_call.1} parent=5 // pred_check
        %p732 = pneg %p731
      $region54: #{tpu_custom_call.1} parent=5 // pred_check_branch
        %734 = sbr.rel (%p732) target = $region56
      $region55: #{tpu_custom_call.1} parent=5 // pred_region
        %s735 = ssub.s32 %s17, 2
        // Predicated region
        $region57: #{tpu_custom_call.1} parent=55 // pred_check
          %p736 = pneg %p198
        $region58: #{tpu_custom_call.1} parent=55 // pred_check_branch
          %738 = sbr.rel (%p736) target = $region60
        $region59: #{tpu_custom_call.1} parent=55 // pred_region
          %s739 = sand.u32 %s183, 1
          %s740 = scalar_lea.sflag [#allocation4], %s739
          %s741 = sand.u32 %s183, 1
          %s742 = scalar_lea.vmem [#allocation3], %s741
          %743 = dma.done %s740, 16
        $region60: #{tpu_custom_call.1} parent=55 // pred_fallthru
          _
      $region56: #{tpu_custom_call.1} parent=5 // pred_fallthru
        _
    $region6: #{tpu_custom_call.1} parent=1 // loop_footer
      %s21 = sadd.s32 1, %s17
    $region7: #{tpu_custom_call.1} parent=1 // loop_footer_branch
      %16 = sbr.rel target = $region3
    $region8: #{tpu_custom_call.1} parent=1 // loop_exit
      _
    %744 = vsyncpa [#allocation4], 1
    %s745 = scalar_lea.sflag [#allocation4], 1
    %746 = vsyncpa %s745, 1

</llo_original>
